<compile_context>
chip_gen: v6e
topology: v6e:2x2x1
jax: 0.10.0
libtpu: 0.0.40
codegen_flags: <defaults>
</compile_context>

<pallas_src>
import jax
import jax.numpy as jnp
from jax import lax
from jax.experimental import pallas as pl
from jax.experimental.pallas import tpu as pltpu


def _round_up(x, m):
    return (x + m - 1) // m * m


def _vmem_capacity_bytes():
    try:
        return int(pltpu.get_tpu_info().vmem_capacity_bytes)
    except Exception:
        return 64 * 1024 * 1024  # v7x floor; conservative and safe on v5e/v6e too


def _make_block_kernel(Nb, OH, OW, C0, Cout, eps):
    M = OH * OW
    inv_cnt = 1.0 / float(Cout * M)

    def kernel(x_ref, w_ref, gamma_ref, beta_ref, o_ref, acc_ref):
        # x_ref   : (Kb, Nb*C0)     bf16  column-phase-split space-to-depth input
        # w_ref   : (2*Cout, Kb)    bf16  conv weights, rows = (row-tap a, out-chan)
        # gamma_ref, beta_ref : (1,) f32  InstanceNorm affine scalars (SMEM)
        # o_ref   : (Nb, Cout, M)   f32   per-sample normalized output
        # acc_ref : (2*Cout, Nb*C0) f32   VMEM scratch holding the raw GEMM result

        # Single MXU matmul per grid step, bf16 inputs / f32 accumulation.
        acc_ref[...] = jnp.dot(w_ref[...], x_ref[...],
                               preferred_element_type=jnp.float32)

        gamma = gamma_ref[0]
        beta = beta_ref[0]
        for n in range(Nb):  # Nb is small (capped at 16) -> cheap unroll
            c0 = n * C0
            # Combine the two row taps: tap a=1 reads OW columns ahead (static slice).
            o_ref[n] = (acc_ref[0:Cout, c0:c0 + M]
                        + acc_ref[Cout:2 * Cout, c0 + OW:c0 + OW + M])
            # Streaming InstanceNorm statistics over the stored raw result.
            t = o_ref[n]
            s1 = jnp.sum(t)
            s2 = jnp.sum(t * t)
            mean = s1 * inv_cnt
            var = jnp.maximum(s2 * inv_cnt - mean * mean, 0.0)
            scale = lax.rsqrt(var + eps) * gamma
            # Second pass: normalize in place (re-reads VMEM, no big live values).
            o_ref[n] = (o_ref[n] - mean) * scale + beta

    return kernel


def block_forward(x_nchw, w_oihw, gamma, beta, *, eps=1e-3, block_batch=None):
    """Forward of Block(down=True, bn=True, dropout=False, leaky=True).

    x_nchw : (N, Cin, H, W) float32
    w_oihw : (Cout, Cin, 4, 4) float32
    gamma, beta : (1,) float32  (InstanceNorm affine scalars)
    returns (N, Cout, H//2, W//2) float32
    """
    N, Cin, H, W = x_nchw.shape
    Cout = w_oihw.shape[0]
    assert H % 2 == 0 and W % 2 == 0, "k=4,s=2,p=1 path assumes even H, W"
    OH, OW = H // 2, W // 2
    M = OH * OW
    Kb = 8 * Cin                 # contraction per row tap: (col-tap b, p, q, cin)
    Wreal = (OH + 1) * OW        # populated columns per sample
    C0 = _round_up(Wreal, 128)   # lane-aligned per-sample column stride

    # ---- layout-only preprocessing (bf16; no im2col blow-up) ----------------
    x = jnp.where(x_nchw >= 0, x_nchw, 0.2 * x_nchw).astype(jnp.bfloat16)  # LeakyReLU (f32 math)
    x = jnp.transpose(x, (0, 2, 3, 1))                       # NHWC
    x = jnp.pad(x, ((0, 0), (1, 1), (1, 1), (0, 0)))         # conv padding = 1
    x = x.reshape(N, OH + 1, 2, OW + 1, 2, Cin)              # (n, i, p, j, q, c)
    # Pre-split the two column phases so the kernel never needs lane-shifted loads.
    xb = jnp.stack([x[:, :, :, 0:OW], x[:, :, :, 1:OW + 1]], axis=0)   # (b,n,i,p,j,q,c)
    xb = jnp.transpose(xb, (0, 3, 5, 6, 1, 2, 4))            # (b, p, q, c, n, i, j)
    xb = xb.reshape(Kb, N, Wreal)
    xb = jnp.pad(xb, ((0, 0), (0, 0), (0, C0 - Wreal)))      # zero pad to aligned stride
    xmat = xb.reshape(Kb, N * C0)                            # (Kb, N*C0) bf16

    # Weights (Cout, Cin, 4, 4) -> (2*Cout, Kb); rows = (a, o), cols = (b, p, q, c).
    w6 = w_oihw.reshape(Cout, Cin, 2, 2, 2, 2)               # (o, c, a, p, b, q)
    wmat = jnp.transpose(w6, (2, 0, 4, 3, 5, 1)).reshape(2 * Cout, Kb).astype(jnp.bfloat16)

    # ---- generation-aware batch tiling --------------------------------------
    vmem_cap = _vmem_capacity_bytes()
    if block_batch is None:
        budget = int(0.45 * vmem_cap)          # leave headroom for compiler temporaries
        per_sample = (2 * Kb * C0 * 2          # X block (bf16), double-buffered
                      + 2 * Cout * M * 4       # output block (f32), double-buffered
                      + 2 * Cout * C0 * 4)     # f32 accumulator scratch
        fixed = 2 * (2 * Cout * Kb * 2)        # weight block (bf16), double-buffered
        block_batch = 1
        for nb in range(1, N + 1):
            if N % nb:
                continue
            if nb > 16:
                continue                        # bound finalize unrolling
            if N >= 2 and (N // nb) < 2:
                continue                        # keep >=2 grid steps (v7x megacore)
            if fixed + nb * per_sample <= budget:
                block_batch = nb
    Nb = block_batch
    assert N % Nb == 0, "block_batch must divide N"
    # TODO(synk): handle a remainder tile so prime / odd N can still use Nb > 1.

    kernel = _make_block_kernel(Nb, OH, OW, C0, Cout, eps)

    out = pl.pallas_call(
        kernel,
        out_shape=jax.ShapeDtypeStruct((N, Cout, M), jnp.float32),
        grid=(N // Nb,),
        in_specs=[
            pl.BlockSpec((Kb, Nb * C0), lambda g: (0, g)),
            pl.BlockSpec((2 * Cout, Kb), lambda g: (0, 0)),
            pl.BlockSpec(memory_space=pltpu.SMEM),
            pl.BlockSpec(memory_space=pltpu.SMEM),
        ],
        out_specs=pl.BlockSpec((Nb, Cout, M), lambda g: (g, 0, 0)),
        scratch_shapes=[pltpu.VMEM((2 * Cout, Nb * C0), jnp.float32)],
        compiler_params=pltpu.CompilerParams(
            dimension_semantics=("parallel",),
            vmem_limit_bytes=int(0.9 * vmem_cap)),
    )(xmat, wmat, gamma.astype(jnp.float32), beta.astype(jnp.float32))

    # (N, Cout, OH*OW) is already channel-major: a trivial reshape gives NCHW.
    return out.reshape(N, Cout, OH, OW)


def block_reference(x_nchw, w_oihw, gamma, beta):
    """Pure-JAX (f32) reference of the PyTorch module, for verification."""
    h = jnp.where(x_nchw >= 0, x_nchw, 0.2 * x_nchw)             # LeakyReLU(0.2)
    y = lax.conv_general_dilated(
        h, w_oihw, window_strides=(2, 2), padding=[(1, 1), (1, 1)],
        dimension_numbers=("NCHW", "OIHW", "NCHW"))
    # InstanceNorm3d(1) on (N,1,C,H,W): normalize each sample over (C,H,W).
    mean = jnp.mean(y, axis=(1, 2, 3), keepdims=True)
    var = jnp.mean((y - mean) ** 2, axis=(1, 2, 3), keepdims=True)
    return (y - mean) / jnp.sqrt(var + 0.001) * gamma[0] + beta[0]


if __name__ == "__main__":
    key = jax.random.PRNGKey(0)
    kx, kw = jax.random.split(key)

    N, Cin, H, W = 2, 4, 16, 16
    Cout = 8

    x = jax.random.normal(kx, (N, Cin, H, W), dtype=jnp.float32)
    w = jax.random.normal(kw, (Cout, Cin, 4, 4), dtype=jnp.float32) * 0.1
    gamma = jnp.full((1,), 1.2, jnp.float32)   # InstanceNorm affine weight
    beta = jnp.full((1,), 0.1, jnp.float32)    # InstanceNorm affine bias

    fwd = jax.jit(block_forward)
    out = jax.block_until_ready(fwd(x, w, gamma, beta))
    ref = jax.block_until_ready(jax.jit(block_reference)(x, w, gamma, beta))

    assert out.shape == (N, Cout, H // 2, W // 2), out.shape
    err = float(jnp.max(jnp.abs(out - ref)))
    # bf16 MXU inputs (f32 accumulation) vs. a pure-f32 reference => loosened tolerance.
    assert err < 5e-2, f"max abs error {err}"
    print("KERNEL_OK")
</pallas_src>

<mosaic_0001>
module attributes {stable_mosaic.version = 11 : i64} {
  func.func @kernel(%arg0: i32, %arg1: memref<32x128xbf16, #tpu.memory_space<vmem>>, %arg2: memref<16x32xbf16, #tpu.memory_space<vmem>>, %arg3: memref<1xf32, #tpu.memory_space<smem>>, %arg4: memref<1xf32, #tpu.memory_space<smem>>, %arg5: memref<1x8x64xf32, #tpu.memory_space<vmem>>, %arg6: memref<16x128xf32, #tpu.memory_space<vmem>>) attributes {dimension_semantics = [#tpu.dimension_semantics<parallel>], iteration_bounds = array<i64: 2>, scalar_prefetch = 0 : i64, scratch_operands = 1 : i64, tpu.core_type = #tpu.core_type<tc>, window_params = [{transform_indices = @transform_0, window_bounds = array<i64: 32, 128>}, {pipeline_mode = #tpu.pipeline_mode<synchronous>, transform_indices = @transform_1, window_bounds = array<i64: 16, 32>}, {transform_indices = @transform_2, window_bounds = array<i64: 1>}, {transform_indices = @transform_3, window_bounds = array<i64: 1>}, {transform_indices = @transform_4, window_bounds = array<i64: 1, 8, 64>}]} {
    %c0 = arith.constant 0 : index
    %c0_0 = arith.constant 0 : index
    %0 = vector.load %arg2[%c0, %c0_0] : memref<16x32xbf16, #tpu.memory_space<vmem>>, vector<16x32xbf16>
    %c0_1 = arith.constant 0 : index
    %c0_2 = arith.constant 0 : index
    %1 = vector.load %arg1[%c0_1, %c0_2] : memref<32x128xbf16, #tpu.memory_space<vmem>>, vector<32x128xbf16>
    %cst = arith.constant dense<0.000000e+00> : vector<16x128xf32>
    %2 = tpu.matmul %0, %1, %cst {dimension_numbers = #tpu.dot_dimension_numbers<[1], [0], [0], [1], [0, 0, 1, 1], [], []>} : vector<16x32xbf16>, vector<32x128xbf16>, vector<16x128xf32> -> vector<16x128xf32>
    %c0_3 = arith.constant 0 : index
    %c0_4 = arith.constant 0 : index
    %3 = vector.load %arg6[%c0_3, %c0_4] : memref<16x128xf32, #tpu.memory_space<vmem>>, vector<16x128xf32>
    tpu.vector_store %arg6[%c0_3, %c0_4], %2 {strides = array<i32>} : memref<16x128xf32, #tpu.memory_space<vmem>>, vector<16x128xf32>,
    %c0_5 = arith.constant 0 : index
    %4 = memref.load %arg3[%c0_5] : memref<1xf32, #tpu.memory_space<smem>>
    %c0_6 = arith.constant 0 : index
    %5 = memref.load %arg4[%c0_6] : memref<1xf32, #tpu.memory_space<smem>>
    %c0_7 = arith.constant 0 : index
    %c0_8 = arith.constant 0 : index
    %6 = vector.load %arg6[%c0_7, %c0_8] : memref<16x128xf32, #tpu.memory_space<vmem>>, vector<8x64xf32>
    %c8 = arith.constant 8 : index
    %c8_9 = arith.constant 8 : index
    %7 = vector.load %arg6[%c8, %c8_9] : memref<16x128xf32, #tpu.memory_space<vmem>>, vector<8x64xf32>
    %8 = arith.addf %6, %7 : vector<8x64xf32>
    %c0_10 = arith.constant 0 : index
    %c0_11 = arith.constant 0 : index
    %c0_12 = arith.constant 0 : index
    %9 = vector.load %arg5[%c0_10, %c0_11, %c0_12] : memref<1x8x64xf32, #tpu.memory_space<vmem>>, vector<1x8x64xf32>
    %10 = vector.shape_cast %9 : vector<1x8x64xf32> to vector<8x64xf32>
    %11 = vector.shape_cast %8 : vector<8x64xf32> to vector<1x8x64xf32>
    tpu.vector_store %arg5[%c0_10, %c0_11, %c0_12], %11 {strides = array<i32>} : memref<1x8x64xf32, #tpu.memory_space<vmem>>, vector<1x8x64xf32>,
    %c0_13 = arith.constant 0 : index
    %c0_14 = arith.constant 0 : index
    %c0_15 = arith.constant 0 : index
    %12 = vector.load %arg5[%c0_13, %c0_14, %c0_15] : memref<1x8x64xf32, #tpu.memory_space<vmem>>, vector<1x8x64xf32>
    %13 = vector.shape_cast %12 : vector<1x8x64xf32> to vector<8x64xf32>
    %14 = vector.shape_cast %13 : vector<8x64xf32> to vector<1x8x64xf32>
    %cst_16 = arith.constant dense<0.000000e+00> : vector<1xf32>
    %15 = vector.multi_reduction <add>, %14, %cst_16 [1, 2] : vector<1x8x64xf32> to vector<1xf32>
    %16 = vector.shape_cast %15 : vector<1xf32> to vector<1x1x1xf32>
    %17 = vector.extract %16[0, 0, 0] : f32 from vector<1x1x1xf32>
    %18 = arith.mulf %13, %13 : vector<8x64xf32>
    %19 = vector.shape_cast %18 : vector<8x64xf32> to vector<1x8x64xf32>
    %cst_17 = arith.constant dense<0.000000e+00> : vector<1xf32>
    %20 = vector.multi_reduction <add>, %19, %cst_17 [1, 2] : vector<1x8x64xf32> to vector<1xf32>
    %21 = vector.shape_cast %20 : vector<1xf32> to vector<1x1x1xf32>
    %22 = vector.extract %21[0, 0, 0] : f32 from vector<1x1x1xf32>
    %cst_18 = arith.constant 0.001953125 : f32
    %23 = arith.mulf %17, %cst_18 : f32
    %cst_19 = arith.constant 0.001953125 : f32
    %24 = arith.mulf %22, %cst_19 : f32
    %25 = arith.mulf %23, %23 : f32
    %26 = arith.subf %24, %25 : f32
    %cst_20 = arith.constant 0.000000e+00 : f32
    %27 = arith.maximumf %26, %cst_20 : f32
    %cst_21 = arith.constant 1.000000e-03 : f32
    %28 = arith.addf %27, %cst_21 : f32
    %29 = math.rsqrt %28 : f32
    %30 = arith.mulf %29, %4 : f32
    %c0_22 = arith.constant 0 : index
    %c0_23 = arith.constant 0 : index
    %c0_24 = arith.constant 0 : index
    %31 = vector.load %arg5[%c0_22, %c0_23, %c0_24] : memref<1x8x64xf32, #tpu.memory_space<vmem>>, vector<1x8x64xf32>
    %32 = vector.shape_cast %31 : vector<1x8x64xf32> to vector<8x64xf32>
    %33 = vector.broadcast %23 : f32 to vector<8x64xf32>
    %34 = arith.subf %32, %33 : vector<8x64xf32>
    %35 = vector.broadcast %30 : f32 to vector<8x64xf32>
    %36 = arith.mulf %34, %35 : vector<8x64xf32>
    %37 = vector.broadcast %5 : f32 to vector<8x64xf32>
    %38 = arith.addf %36, %37 : vector<8x64xf32>
    %c0_25 = arith.constant 0 : index
    %c0_26 = arith.constant 0 : index
    %c0_27 = arith.constant 0 : index
    %39 = vector.load %arg5[%c0_25, %c0_26, %c0_27] : memref<1x8x64xf32, #tpu.memory_space<vmem>>, vector<1x8x64xf32>
    %40 = vector.shape_cast %39 : vector<1x8x64xf32> to vector<8x64xf32>
    %41 = vector.shape_cast %38 : vector<8x64xf32> to vector<1x8x64xf32>
    tpu.vector_store %arg5[%c0_25, %c0_26, %c0_27], %41 {strides = array<i32>} : memref<1x8x64xf32, #tpu.memory_space<vmem>>, vector<1x8x64xf32>,
    return
  }
  func.func @transform_0(%arg0: i32) -> (i32, i32) {
    %c0_i32 = arith.constant 0 : i32
    %c0_i32_0 = arith.constant 0 : i32
    return %c0_i32, %arg0 : i32, i32
  }
  func.func @transform_1(%arg0: i32) -> (i32, i32) {
    %c0_i32 = arith.constant 0 : i32
    %c0_i32_0 = arith.constant 0 : i32
    %c0_i32_1 = arith.constant 0 : i32
    return %c0_i32, %c0_i32_0 : i32, i32
  }
  func.func @transform_2(%arg0: i32) -> i32 {
    %c0_i32 = arith.constant 0 : i32
    %c0_i32_0 = arith.constant 0 : i32
    return %c0_i32 : i32
  }
  func.func @transform_3(%arg0: i32) -> i32 {
    %c0_i32 = arith.constant 0 : i32
    %c0_i32_0 = arith.constant 0 : i32
    return %c0_i32 : i32
  }
  func.func @transform_4(%arg0: i32) -> (i32, i32, i32) {
    %c0_i32 = arith.constant 0 : i32
    %c0_i32_0 = arith.constant 0 : i32
    %c0_i32_1 = arith.constant 0 : i32
    return %arg0, %c0_i32, %c0_i32_0 : i32, i32, i32
  }
}

</mosaic_0001>

<llo_original>
// kernel: block_forward.1
$region0: #{block_forward.1}
  #allocation0 [shape = 'u32[]', space=smem, size = 0x4, offset = 0x4, fixed_abs, tag = 'smem constant byte address 0x4 - core index']
  #allocation1 [shape = 'u32[144,128]{1,0:T(1,128)}', space=vmem, size = 0x12000, scoped, tag = 'internal scratch']
  #allocation2 [shape = 'f32[16,128]{1,0:T(8,128)}', space=vmem, size = 0x2000, scoped, tag = 'scratch operand']
  #allocation3 [shape = 'f32[1]{0:T(128)S(6)}', space=smem, size = 0x200, scoped, tag = 'scoped memory for block_forward.1']
  #allocation4 [shape = 'f32[1]{0:T(128)S(6)}', space=smem, size = 0x200, scoped, tag = 'scoped memory for block_forward.1']
  %s0 = inlined_call_operand.vmem [shape: bf16[32,256], index: 0, kind: input, shape index: {}]
  %s1 = inlined_call_operand.vmem [shape: bf16[16,32], index: 1, kind: input, shape index: {}]
  %s2 = inlined_call_operand.<no memory space> [shape: f32[1], index: 2, kind: input, shape index: {}]
  %s3 = inlined_call_operand.<no memory space> [shape: f32[1], index: 3, kind: input, shape index: {}]
  %s4 = inlined_call_operand.vmem [shape: f32[2,8,64], index: 4, kind: output, shape index: {}]
  %s5 = sld [smem:[#allocation0]]
  $region90: #{block_forward.1} parent=0
    _
  %s7 = ssub.s32 1, %s5
  %s8 = scalar_select 0, %s7, %s5
  %9 = sst [smem:[#allocation3]] %s2
  %10 = sst [smem:[#allocation4]] %s3
  $region1: #{block_forward.1} parent=0
    #allocation5 [shape = 'u8[16384]{0}', space=vmem, size = 0x4000, scoped, tag = 'input window, operand 0']
    loop: start=0, step=1, limit=4
    $region2: #{block_forward.1} parent=1 // loop_pre_header
      _
    $region3: #{block_forward.1} parent=1 // loop_header
      %s12 = sphi 0, %s16
      %p13 = scmp.ge.s32.totalorder %s12, 4
      %s22 = sphi 0, %s24
      %s25 = sphi 0, %s22
      %s26 = sphi 0, %s25
      %s42 = sphi 0, %s26
      %s46 = sphi 0, %s46
      %s48 = sphi 0, %s46
      %s49 = sphi 0, %s48
      %s63 = sphi 0, %s49
      %s67 = sphi 0, %s67
      %s69 = sphi 0, %s67
      %s70 = sphi 0, %s69
      %s84 = sphi 0, %s70
      %s88 = sphi 0, %s88
      %s90 = sphi 0, %s88
      %s91 = sphi 0, %s90
      %s105 = sphi 0, %s91
      %s111 = sphi 0, %s113
      %s114 = sphi 0, %s111
      %s115 = sphi 0, %s114
      %s131 = sphi 0, %s115
    $region4: #{block_forward.1} parent=1 // loop_header_branch
      %15 = sbr.rel (%p13) target = $region8
    $region5: #{block_forward.1} parent=1 // loop_body
      %s17 = ssub.s32 %s12, 1
      %s18 = ssub.s32 %s12, 2
      %s19 = sadd.s32 %s12, 1
      %s20 = ssub.s32 %s12, %s19
      %p21 = scmp.eq.s32.totalorder %s20, 0
      %s23 = sadd.s32 %s22, 1
      %s24 = scalar_select %p21, %s22, %s23
      %p27 = pneg %p21
      %p28 = scmp.eq.s32.totalorder %s12, 1
      %p29 = por %p27, %p28
      %p30 = scmp.ne.s32.totalorder %s22, %s25
      %p31 = scmp.eq.s32.totalorder %s12, 0
      %p32 = por %p30, %p31
      %p33 = scmp.ne.s32.totalorder %s22, %s25
      %p34 = scmp.eq.s32.totalorder %s17, 1
      %p35 = por %p33, %p34
      %p36 = scmp.ne.s32.totalorder %s25, %s26
      %p37 = scmp.eq.s32.totalorder %s17, 0
      %p38 = por %p36, %p37
      %p39 = scmp.ne.s32.totalorder %s25, %s26
      %p40 = scmp.eq.s32.totalorder %s18, 1
      %p41 = por %p39, %p40
      %p43 = scmp.ne.s32.totalorder %s26, %s42
      %p44 = scmp.eq.s32.totalorder %s18, 0
      %p45 = por %p43, %p44
      %s47 = sadd.s32 %s46, 1
      %p50 = scmp.eq.s32.totalorder %s12, 1
      %p51 = scmp.ne.s32.totalorder %s46, %s48
      %p52 = scmp.eq.s32.totalorder %s12, 0
      %p53 = por %p51, %p52
      %p54 = scmp.ne.s32.totalorder %s46, %s48
      %p55 = scmp.eq.s32.totalorder %s17, 1
      %p56 = por %p54, %p55
      %p57 = scmp.ne.s32.totalorder %s48, %s49
      %p58 = scmp.eq.s32.totalorder %s17, 0
      %p59 = por %p57, %p58
      %p60 = scmp.ne.s32.totalorder %s48, %s49
      %p61 = scmp.eq.s32.totalorder %s18, 1
      %p62 = por %p60, %p61
      %p64 = scmp.ne.s32.totalorder %s49, %s63
      %p65 = scmp.eq.s32.totalorder %s18, 0
      %p66 = por %p64, %p65
      %s68 = sadd.s32 %s67, 1
      %p71 = scmp.eq.s32.totalorder %s12, 1
      %p72 = scmp.ne.s32.totalorder %s67, %s69
      %p73 = scmp.eq.s32.totalorder %s12, 0
      %p74 = por %p72, %p73
      %p75 = scmp.ne.s32.totalorder %s67, %s69
      %p76 = scmp.eq.s32.totalorder %s17, 1
      %p77 = por %p75, %p76
      %p78 = scmp.ne.s32.totalorder %s69, %s70
      %p79 = scmp.eq.s32.totalorder %s17, 0
      %p80 = por %p78, %p79
      %p81 = scmp.ne.s32.totalorder %s69, %s70
      %p82 = scmp.eq.s32.totalorder %s18, 1
      %p83 = por %p81, %p82
      %p85 = scmp.ne.s32.totalorder %s70, %s84
      %p86 = scmp.eq.s32.totalorder %s18, 0
      %p87 = por %p85, %p86
      %s89 = sadd.s32 %s88, 1
      %p92 = scmp.eq.s32.totalorder %s12, 1
      %p93 = scmp.ne.s32.totalorder %s88, %s90
      %p94 = scmp.eq.s32.totalorder %s12, 0
      %p95 = por %p93, %p94
      %p96 = scmp.ne.s32.totalorder %s88, %s90
      %p97 = scmp.eq.s32.totalorder %s17, 1
      %p98 = por %p96, %p97
      %p99 = scmp.ne.s32.totalorder %s90, %s91
      %p100 = scmp.eq.s32.totalorder %s17, 0
      %p101 = por %p99, %p100
      %p102 = scmp.ne.s32.totalorder %s90, %s91
      %p103 = scmp.eq.s32.totalorder %s18, 1
      %p104 = por %p102, %p103
      %p106 = scmp.ne.s32.totalorder %s91, %s105
      %p107 = scmp.eq.s32.totalorder %s18, 0
      %p108 = por %p106, %p107
      %s109 = ssub.s32 %s12, %s19
      %p110 = scmp.eq.s32.totalorder %s109, 0
      %s112 = sadd.s32 %s111, 1
      %s113 = scalar_select %p110, %s111, %s112
      %p116 = pneg %p110
      %p117 = scmp.eq.s32.totalorder %s12, 1
      %p118 = por %p116, %p117
      %p119 = scmp.ne.s32.totalorder %s111, %s114
      %p120 = scmp.eq.s32.totalorder %s12, 0
      %p121 = por %p119, %p120
      %p122 = scmp.ne.s32.totalorder %s111, %s114
      %p123 = scmp.eq.s32.totalorder %s17, 1
      %p124 = por %p122, %p123
      %p125 = scmp.ne.s32.totalorder %s114, %s115
      %p126 = scmp.eq.s32.totalorder %s17, 0
      %p127 = por %p125, %p126
      %p128 = scmp.ne.s32.totalorder %s114, %s115
      %p129 = scmp.eq.s32.totalorder %s18, 1
      %p130 = por %p128, %p129
      %p132 = scmp.ne.s32.totalorder %s115, %s131
      %p133 = scmp.eq.s32.totalorder %s18, 0
      %p134 = por %p132, %p133
      %p135 = scmp.le.s32.totalorder 1, %s12
      %p136 = scmp.lt.s32.totalorder %s12, 3
      %p137 = pnand %p135, %p136
      %p138 = pneg %p137
      // Predicated region
      $region9: #{block_forward.1} parent=5 // pred_check
        _
      $region10: #{block_forward.1} parent=5 // pred_check_branch
        %140 = sbr.rel (%p137) target = $region12
      $region11: #{block_forward.1} parent=5 // pred_region
        %s141 = ssub.s32 %s12, 1
        // Predicated region
        $region13: #{block_forward.1} parent=11 // pred_check
          %p142 = pneg %p59
        $region14: #{block_forward.1} parent=11 // pred_check_branch
          %144 = sbr.rel (%p142) target = $region16
        $region15: #{block_forward.1} parent=11 // pred_region
          _
        $region16: #{block_forward.1} parent=11 // pred_fallthru
          _
        // Predicated region
        $region17: #{block_forward.1} parent=11 // pred_check
          %p145 = pneg %p80
        $region18: #{block_forward.1} parent=11 // pred_check_branch
          %147 = sbr.rel (%p145) target = $region20
        $region19: #{block_forward.1} parent=11 // pred_region
          _
        $region20: #{block_forward.1} parent=11 // pred_fallthru
          _
        // Predicated region
        $region21: #{block_forward.1} parent=11 // pred_check
          %p148 = pneg %p101
        $region22: #{block_forward.1} parent=11 // pred_check_branch
          %150 = sbr.rel (%p148) target = $region24
        $region23: #{block_forward.1} parent=11 // pred_region
          _
        $region24: #{block_forward.1} parent=11 // pred_fallthru
          _
      $region12: #{block_forward.1} parent=5 // pred_fallthru
        _
      %p151 = scmp.lt.s32.totalorder %s12, 2
      // Predicated region
      $region25: #{block_forward.1} parent=5 // pred_check
        %p152 = pneg %p151
      $region26: #{block_forward.1} parent=5 // pred_check_branch
        %154 = sbr.rel (%p152) target = $region28
      $region27: #{block_forward.1} parent=5 // pred_region
        // Predicated region
        $region29: #{block_forward.1} parent=27 // pred_check
          %p155 = pneg %p32
        $region30: #{block_forward.1} parent=27 // pred_check_branch
          %157 = sbr.rel (%p155) target = $region32
        $region31: #{block_forward.1} parent=27 // pred_region
          %s158 = sand.u32 %s22, 1
          %s159 = sand.u32 %s22, 1
          %s160 = smul.addr %s159, 16
          %s161 = scalar_lea.vmem [#allocation5], %s160
          %s162 = smul.addr %s12, 4
          %s163 = scalar_lea.vmem %s0, %s162
          // Predicated region
          $region33: #{block_forward.1} parent=31 // pred_check
            _
          $region34: #{block_forward.1} parent=31 // pred_check_branch
            %165 = sbr.rel (0) target = $region36
          $region35: #{block_forward.1} parent=31 // pred_region
            // Predicated region
            $region37: #{block_forward.1} parent=35 // pred_check
              _
            $region38: #{block_forward.1} parent=35 // pred_check_branch
              %167 = sbr.rel target = $region40
            $region39: #{block_forward.1} parent=35 // pred_region
              // Predicated region
              $region52: #{block_forward.1} parent=39 // pred_check
                _
              $region53: #{block_forward.1} parent=39 // pred_check_branch
                %189 = sbr.rel (0) target = $region55
              $region54: #{block_forward.1} parent=39 // pred_region
                loop: start=0, step=1, limit=1
                $region56: #{block_forward.1} parent=54 // loop_pre_header
                  _
                $region57: #{block_forward.1} parent=54 // loop_header
                  %s191 = sphi 0, %s195
                  %p192 = scmp.ge.s32.totalorder %s191, 1
                  %s196 = sphi %s163, %s163
                  %s197 = sphi %s161, %s161
                $region58: #{block_forward.1} parent=54 // loop_header_branch
                  %194 = sbr.rel (%p192) target = $region62
                $region59: #{block_forward.1} parent=54 // loop_body
                  _
                $region60: #{block_forward.1} parent=54 // loop_footer
                  %s195 = sadd.s32 1, %s191
                $region61: #{block_forward.1} parent=54 // loop_footer_branch
                  %190 = sbr.rel target = $region57
                $region62: #{block_forward.1} parent=54 // loop_exit
                  _
                %s199 = ssub.s32 16, 1
                loop: start=0, step=1, limit=1
                $region63: #{block_forward.1} parent=54 // loop_pre_header
                  _
                $region64: #{block_forward.1} parent=54 // loop_header
                  %s201 = sphi 0, %s205
                  %p202 = scmp.ge.s32.totalorder %s201, 1
                  %s206 = sphi %s163, %s163
                  %s207 = sphi %s161, %s161
                $region65: #{block_forward.1} parent=54 // loop_header_branch
                  %204 = sbr.rel (%p202) target = $region69
                $region66: #{block_forward.1} parent=54 // loop_body
                  %v208 = vld [vmem:[%s206] sm:%s199]
                  %209 = vst [vmem:[%s207] sm:%s199] %v208
                  %v210 = vld [vmem:[%s206 + $0x8] sm:%s199]
                  %211 = vst [vmem:[%s207 + $0x4] sm:%s199] %v210
                  %v212 = vld [vmem:[%s206 + $0x10] sm:%s199]
                  %213 = vst [vmem:[%s207 + $0x8] sm:%s199] %v212
                  %v214 = vld [vmem:[%s206 + $0x18] sm:%s199]
                  %215 = vst [vmem:[%s207 + $0xc] sm:%s199] %v214
                $region67: #{block_forward.1} parent=54 // loop_footer
                  %s205 = sadd.s32 1, %s201
                $region68: #{block_forward.1} parent=54 // loop_footer_branch
                  %200 = sbr.rel target = $region64
                $region69: #{block_forward.1} parent=54 // loop_exit
                  _
              $region55: #{block_forward.1} parent=39 // pred_fallthru
                _
            $region40: #{block_forward.1} parent=35 // pred_fallthru
              _
            // Predicated region
            $region41: #{block_forward.1} parent=35 // pred_check
              _
            $region42: #{block_forward.1} parent=35 // pred_check_branch
              %169 = sbr.rel (0) target = $region44
            $region43: #{block_forward.1} parent=35 // pred_region
              %s171 = ssub.s32 16, 1
              loop: start=0, step=1, limit=1
              $region45: #{block_forward.1} parent=43 // loop_pre_header
                _
              $region46: #{block_forward.1} parent=43 // loop_header
                %s173 = sphi 0, %s177
                %p174 = scmp.ge.s32.totalorder %s173, 1
                %s178 = sphi %s163, %s163
                %s179 = sphi %s161, %s161
              $region47: #{block_forward.1} parent=43 // loop_header_branch
                %176 = sbr.rel (%p174) target = $region51
              $region48: #{block_forward.1} parent=43 // loop_body
                %v180 = vld [vmem:[%s178] sm:%s171]
                %181 = vst [vmem:[%s179] sm:%s171] %v180
                %v182 = vld [vmem:[%s178 + $0x8] sm:%s171]
                %183 = vst [vmem:[%s179 + $0x4] sm:%s171] %v182
                %v184 = vld [vmem:[%s178 + $0x10] sm:%s171]
                %185 = vst [vmem:[%s179 + $0x8] sm:%s171] %v184
                %v186 = vld [vmem:[%s178 + $0x18] sm:%s171]
                %187 = vst [vmem:[%s179 + $0xc] sm:%s171] %v186
              $region49: #{block_forward.1} parent=43 // loop_footer
                %s177 = sadd.s32 1, %s173
              $region50: #{block_forward.1} parent=43 // loop_footer_branch
                %172 = sbr.rel target = $region46
              $region51: #{block_forward.1} parent=43 // loop_exit
                _
            $region44: #{block_forward.1} parent=35 // pred_fallthru
              _
          $region36: #{block_forward.1} parent=31 // pred_fallthru
            _
          %216 = vnop
        $region32: #{block_forward.1} parent=27 // pred_fallthru
          _
      $region28: #{block_forward.1} parent=5 // pred_fallthru
        _
      %p217 = scmp.le.s32.totalorder 1, %s12
      %p218 = scmp.lt.s32.totalorder %s12, 3
      %p219 = pnand %p217, %p218
      %p220 = pneg %p219
      // Predicated region
      $region70: #{block_forward.1} parent=5 // pred_check
        _
      $region71: #{block_forward.1} parent=5 // pred_check_branch
        %222 = sbr.rel (%p219) target = $region73
      $region72: #{block_forward.1} parent=5 // pred_region
        %s223 = ssub.s32 %s12, 1
        %s224 = sand.u32 %s25, 1
        %s225 = sand.u32 %s25, 1
        %s226 = smul.addr %s225, 16
        %s227 = scalar_lea.vmem [#allocation5], %s226
        // Predicated region
        $region74: #{block_forward.1} parent=72 // pred_check
          %p228 = pneg %p38
        $region75: #{block_forward.1} parent=72 // pred_check_branch
          %230 = sbr.rel (%p228) target = $region77
        $region76: #{block_forward.1} parent=72 // pred_region
          _
        $region77: #{block_forward.1} parent=72 // pred_fallthru
          _
        %s231 = sand.u32 %s25, 1
        %s232 = sand.u32 %s25, 1
        %s233 = smul.addr %s232, 16
        %s234 = scalar_lea.vmem [#allocation5], %s233
        %p235 = pneg %p38
        %p236 = pneg %p35
        %p237 = pneg %p59
        %p238 = pneg %p56
        %p239 = pneg %p80
        %p240 = pneg %p77
        %p241 = pneg %p101
        %p242 = pneg %p98
        %p243 = pneg %p127
        %p244 = pneg %p124
        %p245 = scmp.lt.s32.totalorder %s17, 1
        %s246 = scalar_select %p245, %s17, 1
        %s247 = smul.addr %s246, 8
        %s248 = scalar_lea.vmem %s4, %s247
        %p249 = scmp.lt.s32.totalorder %s17, 1
        %s250 = scalar_select %p249, %s17, 1
        %s251 = smul.addr %s250, 8
        %s252 = scalar_lea.vmem %s4, %s251
        %v254 = vld [vmem:[%s1] sm:$0xf]
        %v255 = vld [vmem:[%s1 + $0x4] sm:$0xf]
        %v256 = vld [vmem:[%s227] sm:$0xf]
        %v257 = vld [vmem:[%s227 + $0x4] sm:$0xf]
        %v258 = vld [vmem:[%s227 + $0x8] sm:$0xf]
        %v259 = vld [vmem:[%s227 + $0xc] sm:$0xf]
        %v262 = vunpack.c.l.b16 %v254
        %v263 = vunpack.c.l.b16 %v255
        %v264 = vpack.c.b16 %v263, %v262
        %v269 = vunpack.c.l.b16 %v256
        %v270 = vunpack.c.l.b16 %v257
        %v271 = vunpack.c.l.b16 %v258
        %v272 = vunpack.c.l.b16 %v259
        %v273 = vpack.c.b16 %v270, %v269
        %v274 = vpack.c.b16 %v272, %v271
        %vm277 = vcmask 261120
        %v279 = vsel %vm277, %v264, 0
        %281 = vmatprep.subr.bf16.mxu0 0
        %282 = vmatpush1.bf16.msra.mxu0 0
        %283 = vmatprep.subr.bf16.mxu0 0
        %284 = vmatpush1.bf16.msra.mxu0 0
        %285 = vmatprep.subr.bf16.mxu0 0
        %286 = vmatpush1.bf16.msra.mxu0 0
        %287 = vmatprep.subr.bf16.mxu0 0
        %288 = vmatpush1.bf16.msra.mxu0 0
        %289 = vmatprep.subr.bf16.mxu0 0
        %290 = vmatpush1.bf16.msra.mxu0 0
        %291 = vmatprep.subr.bf16.mxu0 0
        %292 = vmatpush1.bf16.msra.mxu0 0
        %293 = vmatprep.subr.bf16.mxu0 0
        %294 = vmatpush1.bf16.msra.mxu0 %v274
        %295 = vmatprep.subr.bf16.mxu0 0
        %296 = vmatpush1.bf16.msra.mxu0 %v273
        %297 = vmatprep.subr.bf16.mxu0 0
        %298 = vmatpush2.bf16.msra.mxu0 0
        %299 = vmatprep.subr.bf16.mxu0 0
        %300 = vmatpush2.bf16.msra.mxu0 0
        %301 = vmatprep.subr.bf16.mxu0 0
        %302 = vmatpush2.bf16.msra.mxu0 0
        %303 = vmatprep.subr.bf16.mxu0 0
        %304 = vmatpush2.bf16.msra.mxu0 0
        %305 = vmatprep.subr.bf16.mxu0 0
        %306 = vmatpush2.bf16.msra.mxu0 0
        %307 = vmatprep.subr.bf16.mxu0 0
        %308 = vmatpush2.bf16.msra.mxu0 0
        %309 = vmatprep.subr.bf16.mxu0 0
        %310 = vmatpush2.bf16.msra.mxu0 0
        %311 = vmatprep.subr.bf16.mxu0 0
        %312 = vmatpush2.bf16.msra.mxu0 0
        %313 = vmatprep.mubr.bf16.mxu0 0
        %314 = vmatmul.mubr.bf16.gmra.mxu0 %v279
        %v315 = vpop.f32.mrf.mxu0
        %v316 = vadd.f32 0.0, %v315
        %v317 = vpop.f32.mrf.mxu0
        %v318 = vpop.f32.mrf.mxu0
        %v319 = vadd.f32 0.0, %v318
        %v320 = vpop.f32.mrf.mxu0
        %321 = vdwg.mxu0
        %322 = vst [vmem:[#allocation2] sm:$0xff] %v316
        %323 = vst [vmem:[#allocation2 + $0x8] sm:$0xff] %v319
        %s324 = sld [smem:[#allocation3]]
        %s325 = sld [smem:[#allocation4]]
        %v326 = vld [vmem:[#allocation2] sm:$0xff]
        %v327 = vld [vmem:[#allocation2 + $0x8] sm:$0xff]
        %329 = vrot.lane.b32.xlu0 %v327, 120
        %v330 = vpop.permute.xlu0 %329
        %v332 = vadd.f32 %v326, %v330
        %vm333 = vcmask 523264
        %334 = vst.msk [vmem:[%s252] sm:$0xff] %vm333, %v332
        %v335 = vld [vmem:[%s252] sm:$0xff]
        %v336 = vsel %vm333, %v335, 0.0
        %337 = vadd.xlane.f32.xlu0 %v336
        %v338 = vpop.xlane.xlu0 %337
        %v339 = vrot.slane %v338, 4
        %v340 = vadd.f32 %v338, %v339
        %v341 = vrot.slane %v340, 2
        %v342 = vadd.f32 %v340, %v341
        %v343 = vrot.slane %v342, 1
        %v344 = vadd.f32 %v342, %v343
        %s345 = vtos %v344
        %v346 = vmul.f32 %v335, %v335
        %v347 = vsel %vm333, %v346, 0.0
        %348 = vadd.xlane.f32.xlu0 %v347
        %v349 = vpop.xlane.xlu0 %348
        %v350 = vrot.slane %v349, 4
        %v351 = vadd.f32 %v349, %v350
        %v352 = vrot.slane %v351, 2
        %v353 = vadd.f32 %v351, %v352
        %v354 = vrot.slane %v353, 1
        %v355 = vadd.f32 %v353, %v354
        %s356 = vtos %v355
        %s357 = smul.f32 %s345, 0.001953125
        %s358 = smul.f32 %s356, 0.001953125
        %s359 = smul.f32 %s357, %s357
        %s360 = ssub.f32 %s358, %s359
        %s361 = smax.f32 %s360, 0.0
        %s362 = sadd.f32 %s361, 0.001
        %v363 = vstv %s362
        %v364 = vrsqrt.pop %v363
        %s365 = vtos %v364
        %s366 = smul.f32 %s365, %s324
        %v367 = vstv %s357
        %v368 = vsub.f32 %v335, %v367
        %v369 = vstv %s366
        %v370 = vmul.f32 %v368, %v369
        %v371 = vstv %s325
        %v372 = vadd.f32 %v370, %v371
        %373 = vst.msk [vmem:[%s252] sm:$0xff] %vm333, %v372
        %p374 = scmp.lt.s32.totalorder %s17, 1
        %s375 = scalar_select %p374, %s17, 1
        %s376 = smul.addr %s375, 8
        %s377 = scalar_lea.vmem %s4, %s376
        // Predicated region
        $region78: #{block_forward.1} parent=72 // pred_check
          %p378 = pneg %p124
        $region79: #{block_forward.1} parent=72 // pred_check_branch
          %380 = sbr.rel (%p378) target = $region81
        $region80: #{block_forward.1} parent=72 // pred_region
          _
        $region81: #{block_forward.1} parent=72 // pred_fallthru
          _
      $region73: #{block_forward.1} parent=5 // pred_fallthru
        _
      %p381 = scmp.le.s32.totalorder 2, %s12
      // Predicated region
      $region82: #{block_forward.1} parent=5 // pred_check
        %p382 = pneg %p381
      $region83: #{block_forward.1} parent=5 // pred_check_branch
        %384 = sbr.rel (%p382) target = $region85
      $region84: #{block_forward.1} parent=5 // pred_region
        %s385 = ssub.s32 %s12, 2
        // Predicated region
        $region86: #{block_forward.1} parent=84 // pred_check
          %p386 = pneg %p130
        $region87: #{block_forward.1} parent=84 // pred_check_branch
          %388 = sbr.rel (%p386) target = $region89
        $region88: #{block_forward.1} parent=84 // pred_region
          %p389 = scmp.lt.s32.totalorder %s18, 1
          %s390 = scalar_select %p389, %s18, 1
          %s391 = smul.addr %s390, 8
          %s392 = scalar_lea.vmem %s4, %s391
        $region89: #{block_forward.1} parent=84 // pred_fallthru
          _
      $region85: #{block_forward.1} parent=5 // pred_fallthru
        _
    $region6: #{block_forward.1} parent=1 // loop_footer
      %s16 = sadd.s32 1, %s12
    $region7: #{block_forward.1} parent=1 // loop_footer_branch
      %11 = sbr.rel target = $region3
    $region8: #{block_forward.1} parent=1 // loop_exit
      _

</llo_original>
